<compile_context>
chip_gen: v5e
topology: v5e:2x2
jax: 0.10.0
libtpu: 0.0.40
codegen_flags: <defaults>
</compile_context>

<pallas_src>
import functools

import jax
import jax.numpy as jnp
from jax.experimental import pallas as pl
from jax.experimental.pallas import tpu as pltpu


def _round_up(x, m):
    return ((x + m - 1) // m) * m


def _vmem_capacity_bytes():
    """Physical VMEM of the current chip (v5e/v6e: 128 MiB, v7x: 64 MiB)."""
    try:
        return int(pltpu.get_tpu_info().vmem_capacity_bytes)
    except Exception:
        return 64 * 2**20            # conservative fallback (v7x size)


def _fcn_kernel(x_ref, w_ref, b_ref, out_ref, *, out_dim, n_layers):
    """Transposed MLP: activations are (features, batch_tile).

    x_ref   : (D, bt)       padded input tile (batch on lanes, features padded)
    w_ref   : (L, D, D)     zero-padded weight stack (torch (out, in) layout,
                            normalization folded into layer 0)
    b_ref   : (L, D, 1)     zero-padded bias stack
    out_ref : (out_dim, bt) lane-dense output tile
    """
    a = x_ref[...]                                              # (D, bt)
    for i in range(n_layers):
        # Uniform (D,D) x (D,bt) matmul; padded weight rows/cols are zero and
        # tanh(0) == 0, so zero-padding is preserved exactly through layers.
        z = jnp.dot(w_ref[i], a, preferred_element_type=jnp.float32) + b_ref[i]
        a = jnp.tanh(z) if i + 1 < n_layers else z              # (D, bt)
    out_ref[...] = a[:out_dim, :].astype(out_ref.dtype)


def prepare_fcn_params(weights, biases, lb, ub):
    """Build padded (L,D,D)/(L,D,1) parameter stacks ONCE at init time.

    The normalization (x - lb) / (ub - lb) is folded into layer 0:
        W0' = W0 * (1 / (ub - lb))   (per-input-column scale)
        b0' = b0 - W0' @ lb
    so the kernel runs a plain MLP.  (Differs from the torch divide by a few
    ulps; well inside float32 tolerance for this forward.)
    """
    f32 = jnp.float32
    in_dim = weights[0].shape[1]
    out_dim = int(weights[-1].shape[0])
    dims = [in_dim] + [int(w.shape[0]) for w in weights]
    D = _round_up(max(dims), 8)                 # uniform padded feature dim

    lb_f = jnp.reshape(jnp.asarray(lb, f32), (in_dim,))
    ub_f = jnp.reshape(jnp.asarray(ub, f32), (in_dim,))
    inv = 1.0 / (ub_f - lb_f)

    w_list, b_list = [], []
    for i, (w, b) in enumerate(zip(weights, biases)):
        w = jnp.asarray(w, f32)
        b = jnp.reshape(jnp.asarray(b, f32), (-1,))
        if i == 0:
            w = w * inv[None, :]                # fold normalization scale
            b = b - w @ lb_f                    # fold normalization shift
        d_out, d_in = w.shape
        w_list.append(jnp.pad(w, ((0, D - d_out), (0, D - d_in))))
        b_list.append(jnp.pad(b, (0, D - d_out)))
    w_stack = jnp.stack(w_list)                 # (L, D, D)
    b_stack = jnp.stack(b_list)[:, :, None]     # (L, D, 1)
    return w_stack, b_stack, out_dim


def fcn_forward(x, w_stack, b_stack, *, out_dim, batch_tile=32768):
    """Pallas forward.  x: (N, in_dim) f32; stacks from prepare_fcn_params."""
    f32 = jnp.float32
    N, in_dim = x.shape
    L, D, _ = w_stack.shape

    # ---- generation-aware batch tile / VMEM budget -----------------------
    cap = _vmem_capacity_bytes()
    budget = max(16 * 2**20, min((3 * cap) // 4, cap - 24 * 2**20))
    per_point = 4 * (6 * D + 2 * out_dim)       # x dbuf + out dbuf + live acts
    w_bytes = 2 * 4 * L * D * (D + 1)           # double-buffered param stacks
    bt_vmem = max(128, ((budget - w_bytes) // per_point) // 128 * 128)

    bt = min(int(batch_tile), bt_vmem, _round_up(N, 128))
    bt = max(128, (bt // 128) * 128)            # 128-aligned, no forced split
    grid_n = pl.cdiv(N, bt)
    n_pad = grid_n * bt

    footprint = per_point * bt + w_bytes + 4 * 2**20
    vmem_limit = int(min(cap - 8 * 2**20, max(32 * 2**20, footprint)))

    # ---- layout plumbing (single pad+transpose; params prebuilt at init) --
    x_t = jnp.pad(jnp.transpose(x.astype(f32)),
                  ((0, D - in_dim), (0, n_pad - N)))            # (D, n_pad)

    kernel = functools.partial(_fcn_kernel, out_dim=out_dim, n_layers=L)

    out_t = pl.pallas_call(
        kernel,
        out_shape=jax.ShapeDtypeStruct((out_dim, n_pad), f32),
        grid_spec=pltpu.PrefetchScalarGridSpec(
            num_scalar_prefetch=0,
            grid=(grid_n,),
            in_specs=[
                pl.BlockSpec((D, bt), lambda i: (0, i)),         # x tile
                pl.BlockSpec((L, D, D), lambda i: (0, 0, 0)),    # weights (const)
                pl.BlockSpec((L, D, 1), lambda i: (0, 0, 0)),    # biases  (const)
            ],
            out_specs=pl.BlockSpec((out_dim, bt), lambda i: (0, i)),
        ),
        compiler_params=pltpu.CompilerParams(
            dimension_semantics=("parallel",),
            vmem_limit_bytes=vmem_limit,
        ),
    )(x_t, w_stack, b_stack)

    # Drop batch padding; return (N, out_dim) float32.
    return jnp.transpose(out_t[:, :N])


def init_params(layers, key):
    """Xavier-normal weights (gain=1.0), zero biases — matches module __init__.

    Weights are stored in torch nn.Linear layout (out_features, in_features).
    """
    weights, biases = [], []
    for i in range(len(layers) - 1):
        key, sub = jax.random.split(key)
        fan_in, fan_out = layers[i], layers[i + 1]
        std = jnp.sqrt(2.0 / (fan_in + fan_out))
        w = std * jax.random.normal(sub, (fan_out, fan_in), dtype=jnp.float32)
        b = jnp.zeros((fan_out,), dtype=jnp.float32)
        weights.append(w)
        biases.append(b)
    return weights, biases


def fcn_forward_ref(x, lb, ub, weights, biases):
    """Pure-JAX reference of the torch forward()."""
    a = (x - lb) / (ub - lb)
    n = len(weights)
    for i in range(n):
        z = a @ weights[i].T + biases[i]
        a = jnp.tanh(z) if i + 1 < n else z
    return a


if __name__ == "__main__":
    # Small, module-consistent shapes: 2-D PINN input, two hidden layers.
    layers = [2, 32, 32, 1]          # layers[0]=spatial dims, layers[-1]=u(x)
    N = 256                          # number of collocation points (batch)

    key = jax.random.PRNGKey(0)
    key, kx = jax.random.split(key)
    x = jax.random.uniform(kx, (N, layers[0]), dtype=jnp.float32,
                           minval=-1.0, maxval=1.0)

    # Domain bounds lb/ub (globals in the torch script) — fixed deterministically.
    lb = jnp.array([[-1.0, -1.0]], dtype=jnp.float32)
    ub = jnp.array([[1.0, 1.0]], dtype=jnp.float32)

    weights, biases = init_params(layers, key)

    # Parameter stacks built once (init-time), reused across forward calls.
    w_stack, b_stack, out_dim = prepare_fcn_params(weights, biases, lb, ub)
    fwd = jax.jit(functools.partial(fcn_forward, out_dim=out_dim))

    y = jax.block_until_ready(fwd(x, w_stack, b_stack))

    y_ref = fcn_forward_ref(x, lb, ub, weights, biases)
    assert y.shape == (N, layers[-1])
    assert y.dtype == jnp.float32
    assert jnp.allclose(y, y_ref, atol=1e-5, rtol=1e-5), "mismatch vs reference"

    # TODO(synk): loss_BC / loss_PDE / LBFGS closure are optimizer/host logic;
    # loss_PDE additionally needs d u/dx and d2u/dx2 through this forward,
    # which requires a custom_vjp/jvp (pallas_call has no automatic autodiff).
    print("KERNEL_OK")
</pallas_src>

<mosaic_0001>
module attributes {stable_mosaic.version = 11 : i64} {
  func.func @_fcn_kernel(%arg0: i32, %arg1: memref<32x256xf32, #tpu.memory_space<vmem>>, %arg2: memref<3x32x32xf32, #tpu.memory_space<vmem>>, %arg3: memref<3x32x1xf32, #tpu.memory_space<vmem>>, %arg4: memref<1x256xf32, #tpu.memory_space<vmem>>) attributes {dimension_semantics = [#tpu.dimension_semantics<parallel>], iteration_bounds = array<i64: 1>, scalar_prefetch = 0 : i64, scratch_operands = 0 : i64, tpu.core_type = #tpu.core_type<tc>, window_params = [{transform_indices = @transform_0, window_bounds = array<i64: 32, 256>}, {pipeline_mode = #tpu.pipeline_mode<synchronous>, transform_indices = @transform_1, window_bounds = array<i64: 3, 32, 32>}, {pipeline_mode = #tpu.pipeline_mode<synchronous>, transform_indices = @transform_2, window_bounds = array<i64: 3, 32, 1>}, {transform_indices = @transform_3, window_bounds = array<i64: 1, 256>}]} {
    %c0 = arith.constant 0 : index
    %c0_0 = arith.constant 0 : index
    %0 = vector.load %arg1[%c0, %c0_0] : memref<32x256xf32, #tpu.memory_space<vmem>>, vector<32x256xf32>
    %c0_1 = arith.constant 0 : index
    %c0_2 = arith.constant 0 : index
    %c0_3 = arith.constant 0 : index
    %1 = vector.load %arg2[%c0_1, %c0_2, %c0_3] : memref<3x32x32xf32, #tpu.memory_space<vmem>>, vector<1x32x32xf32>
    %2 = vector.shape_cast %1 : vector<1x32x32xf32> to vector<32x32xf32>
    %cst = arith.constant dense<0.000000e+00> : vector<32x256xf32>
    %3 = tpu.matmul %2, %0, %cst {dimension_numbers = #tpu.dot_dimension_numbers<[1], [0], [0], [1], [0, 0, 1, 1], [], []>} : vector<32x32xf32>, vector<32x256xf32>, vector<32x256xf32> -> vector<32x256xf32>
    %c0_4 = arith.constant 0 : index
    %c0_5 = arith.constant 0 : index
    %c0_6 = arith.constant 0 : index
    %4 = vector.load %arg3[%c0_4, %c0_5, %c0_6] : memref<3x32x1xf32, #tpu.memory_space<vmem>>, vector<1x32x1xf32>
    %5 = vector.shape_cast %4 : vector<1x32x1xf32> to vector<32x1xf32>
    %6 = vector.broadcast %5 : vector<32x1xf32> to vector<32x256xf32>
    %7 = arith.addf %3, %6 : vector<32x256xf32>
    %8 = math.tanh %7 : vector<32x256xf32>
    %c1 = arith.constant 1 : index
    %c0_7 = arith.constant 0 : index
    %c0_8 = arith.constant 0 : index
    %9 = vector.load %arg2[%c1, %c0_7, %c0_8] : memref<3x32x32xf32, #tpu.memory_space<vmem>>, vector<1x32x32xf32>
    %10 = vector.shape_cast %9 : vector<1x32x32xf32> to vector<32x32xf32>
    %cst_9 = arith.constant dense<0.000000e+00> : vector<32x256xf32>
    %11 = tpu.matmul %10, %8, %cst_9 {dimension_numbers = #tpu.dot_dimension_numbers<[1], [0], [0], [1], [0, 0, 1, 1], [], []>} : vector<32x32xf32>, vector<32x256xf32>, vector<32x256xf32> -> vector<32x256xf32>
    %c1_10 = arith.constant 1 : index
    %c0_11 = arith.constant 0 : index
    %c0_12 = arith.constant 0 : index
    %12 = vector.load %arg3[%c1_10, %c0_11, %c0_12] : memref<3x32x1xf32, #tpu.memory_space<vmem>>, vector<1x32x1xf32>
    %13 = vector.shape_cast %12 : vector<1x32x1xf32> to vector<32x1xf32>
    %14 = vector.broadcast %13 : vector<32x1xf32> to vector<32x256xf32>
    %15 = arith.addf %11, %14 : vector<32x256xf32>
    %16 = math.tanh %15 : vector<32x256xf32>
    %c2 = arith.constant 2 : index
    %c0_13 = arith.constant 0 : index
    %c0_14 = arith.constant 0 : index
    %17 = vector.load %arg2[%c2, %c0_13, %c0_14] : memref<3x32x32xf32, #tpu.memory_space<vmem>>, vector<1x32x32xf32>
    %18 = vector.shape_cast %17 : vector<1x32x32xf32> to vector<32x32xf32>
    %cst_15 = arith.constant dense<0.000000e+00> : vector<32x256xf32>
    %19 = tpu.matmul %18, %16, %cst_15 {dimension_numbers = #tpu.dot_dimension_numbers<[1], [0], [0], [1], [0, 0, 1, 1], [], []>} : vector<32x32xf32>, vector<32x256xf32>, vector<32x256xf32> -> vector<32x256xf32>
    %c2_16 = arith.constant 2 : index
    %c0_17 = arith.constant 0 : index
    %c0_18 = arith.constant 0 : index
    %20 = vector.load %arg3[%c2_16, %c0_17, %c0_18] : memref<3x32x1xf32, #tpu.memory_space<vmem>>, vector<1x32x1xf32>
    %21 = vector.shape_cast %20 : vector<1x32x1xf32> to vector<32x1xf32>
    %22 = vector.broadcast %21 : vector<32x1xf32> to vector<32x256xf32>
    %23 = arith.addf %19, %22 : vector<32x256xf32>
    %24 = vector.extract_strided_slice %23 {offsets = [0, 0], sizes = [1, 256], strides = [1, 1]} : vector<32x256xf32> to vector<1x256xf32>
    %c0_19 = arith.constant 0 : index
    %c0_20 = arith.constant 0 : index
    %25 = vector.load %arg4[%c0_19, %c0_20] : memref<1x256xf32, #tpu.memory_space<vmem>>, vector<1x256xf32>
    tpu.vector_store %arg4[%c0_19, %c0_20], %24 {strides = array<i32>} : memref<1x256xf32, #tpu.memory_space<vmem>>, vector<1x256xf32>,
    return
  }
  func.func @transform_0(%arg0: i32) -> (i32, i32) {
    %c0_i32 = arith.constant 0 : i32
    %c0_i32_0 = arith.constant 0 : i32
    return %c0_i32, %arg0 : i32, i32
  }
  func.func @transform_1(%arg0: i32) -> (i32, i32, i32) {
    %c0_i32 = arith.constant 0 : i32
    %c0_i32_0 = arith.constant 0 : i32
    %c0_i32_1 = arith.constant 0 : i32
    %c0_i32_2 = arith.constant 0 : i32
    return %c0_i32, %c0_i32_0, %c0_i32_1 : i32, i32, i32
  }
  func.func @transform_2(%arg0: i32) -> (i32, i32, i32) {
    %c0_i32 = arith.constant 0 : i32
    %c0_i32_0 = arith.constant 0 : i32
    %c0_i32_1 = arith.constant 0 : i32
    %c0_i32_2 = arith.constant 0 : i32
    return %c0_i32, %c0_i32_0, %c0_i32_1 : i32, i32, i32
  }
  func.func @transform_3(%arg0: i32) -> (i32, i32) {
    %c0_i32 = arith.constant 0 : i32
    %c0_i32_0 = arith.constant 0 : i32
    return %c0_i32, %arg0 : i32, i32
  }
}

</mosaic_0001>

<llo_original>
// kernel: fcn_forward.1
$region0: #{fcn_forward.1}
  #allocation0 [shape = 'u32[]', space=smem, size = 0x4, offset = 0x4, fixed_abs, tag = 'smem constant byte address 0x4 - core index']
  #allocation1 [shape = 'u32[72,128]{1,0:T(1,128)}', space=vmem, size = 0x9000, scoped, tag = 'internal scratch']
  %s0 = inlined_call_operand.vmem [shape: f32[32,256], index: 0, kind: input, shape index: {}]
  %s1 = inlined_call_operand.vmem [shape: f32[3,32,32], index: 1, kind: input, shape index: {}]
  %s2 = inlined_call_operand.vmem [shape: f32[3,32,1], index: 2, kind: input, shape index: {}]
  %s3 = inlined_call_operand.hbm [shape: f32[1,256], index: 3, kind: output, shape index: {}]
  %s4 = sld [smem:[#allocation0]]
  $region22: #{fcn_forward.1} parent=0
    _
  %s6 = ssub.s32 1, %s4
  %s7 = scalar_select 0, %s6, %s4
  $region1: #{fcn_forward.1} parent=0
    #allocation2 [shape = 'u8[1024]{0}', space=vmem, size = 0x400, scoped, tag = 'output window, operand 0, single buffered']
    #allocation3 [shape = 's32[1]{0}', space=sflag, size = 0x4, scoped, tag = 'scoped memory for fcn_forward.1']
    %8 = vsyncpa [#allocation3], 0
    // Predicated region
    $region2: #{fcn_forward.1} parent=1 // pred_check
      _
    $region3: #{fcn_forward.1} parent=1 // pred_check_branch
      %10 = sbr.rel (0) target = $region5
    $region4: #{fcn_forward.1} parent=1 // pred_region
      _
    $region5: #{fcn_forward.1} parent=1 // pred_fallthru
      _
    // Predicated region
    $region6: #{fcn_forward.1} parent=1 // pred_check
      _
    $region7: #{fcn_forward.1} parent=1 // pred_check_branch
      %12 = sbr.rel (0) target = $region9
    $region8: #{fcn_forward.1} parent=1 // pred_region
      _
    $region9: #{fcn_forward.1} parent=1 // pred_fallthru
      _
    // Predicated region
    $region10: #{fcn_forward.1} parent=1 // pred_check
      _
    $region11: #{fcn_forward.1} parent=1 // pred_check_branch
      %14 = sbr.rel (0) target = $region13
    $region12: #{fcn_forward.1} parent=1 // pred_region
      _
    $region13: #{fcn_forward.1} parent=1 // pred_fallthru
      _
    %v15 = vld [vmem:[%s0] sm:$0xff]
    %v16 = vld [vmem:[%s0 + $0x8] sm:$0xff]
    %v17 = vld [vmem:[%s0 + $0x10] sm:$0xff]
    %v18 = vld [vmem:[%s0 + $0x18] sm:$0xff]
    %v19 = vld [vmem:[%s0 + $0x20] sm:$0xff]
    %v20 = vld [vmem:[%s0 + $0x28] sm:$0xff]
    %v21 = vld [vmem:[%s0 + $0x30] sm:$0xff]
    %v22 = vld [vmem:[%s0 + $0x38] sm:$0xff]
    %v23 = vld [vmem:[%s1] sm:$0xff]
    %v24 = vld [vmem:[%s1 + $0x8] sm:$0xff]
    %v25 = vld [vmem:[%s1 + $0x10] sm:$0xff]
    %v26 = vld [vmem:[%s1 + $0x18] sm:$0xff]
    %v27 = vld [vmem:[%s2] sm:$0xff]
    %v28 = vld [vmem:[%s2 + $0x8] sm:$0xff]
    %v29 = vld [vmem:[%s2 + $0x10] sm:$0xff]
    %v30 = vld [vmem:[%s2 + $0x18] sm:$0xff]
    %32 = vset.pattern.permute.xlu0 0
    %33 = vperm.xlu0 %32, %v27
    %v34 = vpop.permute.xlu0 %33
    %37 = vset.pattern.permute.xlu0 0
    %38 = vperm.xlu0 %37, %v28
    %v39 = vpop.permute.xlu0 %38
    %42 = vset.pattern.permute.xlu0 0
    %43 = vperm.xlu0 %42, %v29
    %v44 = vpop.permute.xlu0 %43
    %47 = vset.pattern.permute.xlu0 0
    %48 = vperm.xlu0 %47, %v30
    %v49 = vpop.permute.xlu0 %48
    %vm51 = vcmask 261120
    %v53 = vsel %vm51, %v23, 0
    %v56 = vsel %vm51, %v24, 0
    %v59 = vsel %vm51, %v25, 0
    %v62 = vsel %vm51, %v26, 0
    %64 = vmatpush.msra.mxu0 0.0
    %65 = vmatpush.msra.mxu0 0.0
    %66 = vmatpush.msra.mxu0 0.0
    %67 = vmatpush.msra.mxu0 0.0
    %68 = vmatpush.msra.mxu0 0.0
    %69 = vmatpush.msra.mxu0 0.0
    %70 = vmatpush.msra.mxu0 0.0
    %71 = vmatpush.msra.mxu0 0.0
    %72 = vmatpush.msra.mxu0 0.0
    %73 = vmatpush.msra.mxu0 0.0
    %74 = vmatpush.msra.mxu0 0.0
    %75 = vmatpush.msra.mxu0 0.0
    %76 = vmatpush.msra.mxu0 %v21
    %77 = vmatpush.msra.mxu0 %v19
    %78 = vmatpush.msra.mxu0 %v17
    %79 = vmatpush.msra.mxu0 %v15
    %80 = vmatmul.f32.gmra.mxu0 %v53
    %v81 = vpop.f32.mrf.mxu0
    %v82 = vadd.f32 %v34, %v81
    %83 = vmatmul.f32.gmra.mxu0 %v56
    %v84 = vpop.f32.mrf.mxu0
    %v85 = vadd.f32 %v39, %v84
    %86 = vmatmul.f32.gmra.mxu0 %v59
    %v87 = vpop.f32.mrf.mxu0
    %v88 = vadd.f32 %v44, %v87
    %89 = vmatmul.f32.gmra.mxu0 %v62
    %v90 = vpop.f32.mrf.mxu0
    %v91 = vadd.f32 %v49, %v90
    %92 = vdwg.mxu0
    %93 = vmatpush.msra.mxu0 0.0
    %94 = vmatpush.msra.mxu0 0.0
    %95 = vmatpush.msra.mxu0 0.0
    %96 = vmatpush.msra.mxu0 0.0
    %97 = vmatpush.msra.mxu0 0.0
    %98 = vmatpush.msra.mxu0 0.0
    %99 = vmatpush.msra.mxu0 0.0
    %100 = vmatpush.msra.mxu0 0.0
    %101 = vmatpush.msra.mxu0 0.0
    %102 = vmatpush.msra.mxu0 0.0
    %103 = vmatpush.msra.mxu0 0.0
    %104 = vmatpush.msra.mxu0 0.0
    %105 = vmatpush.msra.mxu0 %v22
    %106 = vmatpush.msra.mxu0 %v20
    %107 = vmatpush.msra.mxu0 %v18
    %108 = vmatpush.msra.mxu0 %v16
    %109 = vmatmul.f32.gmra.mxu0 %v53
    %v110 = vpop.f32.mrf.mxu0
    %v111 = vadd.f32 %v34, %v110
    %112 = vmatmul.f32.gmra.mxu0 %v56
    %v113 = vpop.f32.mrf.mxu0
    %v114 = vadd.f32 %v39, %v113
    %115 = vmatmul.f32.gmra.mxu0 %v59
    %v116 = vpop.f32.mrf.mxu0
    %v117 = vadd.f32 %v44, %v116
    %118 = vmatmul.f32.gmra.mxu0 %v62
    %v119 = vpop.f32.mrf.mxu0
    %v120 = vadd.f32 %v49, %v119
    %121 = vdwg.mxu0
    %v122 = vtanh.pop %v82
    %v123 = vtanh.pop %v111
    %v124 = vtanh.pop %v85
    %v125 = vtanh.pop %v114
    %v126 = vtanh.pop %v88
    %v127 = vtanh.pop %v117
    %v128 = vtanh.pop %v91
    %v129 = vtanh.pop %v120
    %s130 = scalar_lea.vmem %s1, 32
    %v131 = vld [vmem:[%s130] sm:$0xff]
    %v132 = vld [vmem:[%s130 + $0x8] sm:$0xff]
    %v133 = vld [vmem:[%s130 + $0x10] sm:$0xff]
    %v134 = vld [vmem:[%s130 + $0x18] sm:$0xff]
    %s135 = scalar_lea.vmem %s2, 32
    %v136 = vld [vmem:[%s135] sm:$0xff]
    %v137 = vld [vmem:[%s135 + $0x8] sm:$0xff]
    %v138 = vld [vmem:[%s135 + $0x10] sm:$0xff]
    %v139 = vld [vmem:[%s135 + $0x18] sm:$0xff]
    %141 = vset.pattern.permute.xlu0 0
    %142 = vperm.xlu0 %141, %v136
    %v143 = vpop.permute.xlu0 %142
    %146 = vset.pattern.permute.xlu0 0
    %147 = vperm.xlu0 %146, %v137
    %v148 = vpop.permute.xlu0 %147
    %151 = vset.pattern.permute.xlu0 0
    %152 = vperm.xlu0 %151, %v138
    %v153 = vpop.permute.xlu0 %152
    %156 = vset.pattern.permute.xlu0 0
    %157 = vperm.xlu0 %156, %v139
    %v158 = vpop.permute.xlu0 %157
    %v161 = vsel %vm51, %v131, 0
    %v164 = vsel %vm51, %v132, 0
    %v167 = vsel %vm51, %v133, 0
    %v170 = vsel %vm51, %v134, 0
    %172 = vmatpush.msra.mxu0 0.0
    %173 = vmatpush.msra.mxu0 0.0
    %174 = vmatpush.msra.mxu0 0.0
    %175 = vmatpush.msra.mxu0 0.0
    %176 = vmatpush.msra.mxu0 0.0
    %177 = vmatpush.msra.mxu0 0.0
    %178 = vmatpush.msra.mxu0 0.0
    %179 = vmatpush.msra.mxu0 0.0
    %180 = vmatpush.msra.mxu0 0.0
    %181 = vmatpush.msra.mxu0 0.0
    %182 = vmatpush.msra.mxu0 0.0
    %183 = vmatpush.msra.mxu0 0.0
    %184 = vmatpush.msra.mxu0 %v128
    %185 = vmatpush.msra.mxu0 %v126
    %186 = vmatpush.msra.mxu0 %v124
    %187 = vmatpush.msra.mxu0 %v122
    %188 = vmatmul.f32.gmra.mxu0 %v161
    %v189 = vpop.f32.mrf.mxu0
    %v190 = vadd.f32 %v143, %v189
    %191 = vmatmul.f32.gmra.mxu0 %v164
    %v192 = vpop.f32.mrf.mxu0
    %v193 = vadd.f32 %v148, %v192
    %194 = vmatmul.f32.gmra.mxu0 %v167
    %v195 = vpop.f32.mrf.mxu0
    %v196 = vadd.f32 %v153, %v195
    %197 = vmatmul.f32.gmra.mxu0 %v170
    %v198 = vpop.f32.mrf.mxu0
    %v199 = vadd.f32 %v158, %v198
    %200 = vdwg.mxu0
    %201 = vmatpush.msra.mxu0 0.0
    %202 = vmatpush.msra.mxu0 0.0
    %203 = vmatpush.msra.mxu0 0.0
    %204 = vmatpush.msra.mxu0 0.0
    %205 = vmatpush.msra.mxu0 0.0
    %206 = vmatpush.msra.mxu0 0.0
    %207 = vmatpush.msra.mxu0 0.0
    %208 = vmatpush.msra.mxu0 0.0
    %209 = vmatpush.msra.mxu0 0.0
    %210 = vmatpush.msra.mxu0 0.0
    %211 = vmatpush.msra.mxu0 0.0
    %212 = vmatpush.msra.mxu0 0.0
    %213 = vmatpush.msra.mxu0 %v129
    %214 = vmatpush.msra.mxu0 %v127
    %215 = vmatpush.msra.mxu0 %v125
    %216 = vmatpush.msra.mxu0 %v123
    %217 = vmatmul.f32.gmra.mxu0 %v161
    %v218 = vpop.f32.mrf.mxu0
    %v219 = vadd.f32 %v143, %v218
    %220 = vmatmul.f32.gmra.mxu0 %v164
    %v221 = vpop.f32.mrf.mxu0
    %v222 = vadd.f32 %v148, %v221
    %223 = vmatmul.f32.gmra.mxu0 %v167
    %v224 = vpop.f32.mrf.mxu0
    %v225 = vadd.f32 %v153, %v224
    %226 = vmatmul.f32.gmra.mxu0 %v170
    %v227 = vpop.f32.mrf.mxu0
    %v228 = vadd.f32 %v158, %v227
    %229 = vdwg.mxu0
    %v230 = vtanh.pop %v190
    %v231 = vtanh.pop %v219
    %v232 = vtanh.pop %v193
    %v233 = vtanh.pop %v222
    %v234 = vtanh.pop %v196
    %v235 = vtanh.pop %v225
    %v236 = vtanh.pop %v199
    %v237 = vtanh.pop %v228
    %s238 = scalar_lea.vmem %s1, 64
    %v239 = vld [vmem:[%s238] sm:$0xff]
    %v240 = vld [vmem:[%s238 + $0x8] sm:$0xff]
    %v241 = vld [vmem:[%s238 + $0x10] sm:$0xff]
    %v242 = vld [vmem:[%s238 + $0x18] sm:$0xff]
    %s243 = scalar_lea.vmem %s2, 64
    %v244 = vld [vmem:[%s243] sm:$0xff]
    %v245 = vld [vmem:[%s243 + $0x8] sm:$0xff]
    %v246 = vld [vmem:[%s243 + $0x10] sm:$0xff]
    %v247 = vld [vmem:[%s243 + $0x18] sm:$0xff]
    %249 = vset.pattern.permute.xlu0 0
    %250 = vperm.xlu0 %249, %v244
    %v251 = vpop.permute.xlu0 %250
    %254 = vset.pattern.permute.xlu0 0
    %255 = vperm.xlu0 %254, %v245
    %v256 = vpop.permute.xlu0 %255
    %258 = vset.pattern.permute.xlu0 0
    %259 = vperm.xlu0 %258, %v246
    %v260 = vpop.permute.xlu0 %259
    %262 = vset.pattern.permute.xlu0 0
    %263 = vperm.xlu0 %262, %v247
    %v264 = vpop.permute.xlu0 %263
    %v266 = vsel %vm51, %v239, 0
    %v269 = vsel %vm51, %v240, 0
    %v272 = vsel %vm51, %v241, 0
    %v275 = vsel %vm51, %v242, 0
    %277 = vmatpush.msra.mxu0 0.0
    %278 = vmatpush.msra.mxu0 0.0
    %279 = vmatpush.msra.mxu0 0.0
    %280 = vmatpush.msra.mxu0 0.0
    %281 = vmatpush.msra.mxu0 0.0
    %282 = vmatpush.msra.mxu0 0.0
    %283 = vmatpush.msra.mxu0 0.0
    %284 = vmatpush.msra.mxu0 0.0
    %285 = vmatpush.msra.mxu0 0.0
    %286 = vmatpush.msra.mxu0 0.0
    %287 = vmatpush.msra.mxu0 0.0
    %288 = vmatpush.msra.mxu0 0.0
    %289 = vmatpush.msra.mxu0 %v236
    %290 = vmatpush.msra.mxu0 %v234
    %291 = vmatpush.msra.mxu0 %v232
    %292 = vmatpush.msra.mxu0 %v230
    %293 = vmatmul.f32.gmra.mxu0 %v266
    %v294 = vpop.f32.mrf.mxu0
    %v295 = vadd.f32 %v251, %v294
    %296 = vmatmul.f32.gmra.mxu0 %v269
    %v297 = vpop.f32.mrf.mxu0
    %298 = vmatmul.f32.gmra.mxu0 %v272
    %v299 = vpop.f32.mrf.mxu0
    %300 = vmatmul.f32.gmra.mxu0 %v275
    %v301 = vpop.f32.mrf.mxu0
    %302 = vdwg.mxu0
    %303 = vmatpush.msra.mxu0 0.0
    %304 = vmatpush.msra.mxu0 0.0
    %305 = vmatpush.msra.mxu0 0.0
    %306 = vmatpush.msra.mxu0 0.0
    %307 = vmatpush.msra.mxu0 0.0
    %308 = vmatpush.msra.mxu0 0.0
    %309 = vmatpush.msra.mxu0 0.0
    %310 = vmatpush.msra.mxu0 0.0
    %311 = vmatpush.msra.mxu0 0.0
    %312 = vmatpush.msra.mxu0 0.0
    %313 = vmatpush.msra.mxu0 0.0
    %314 = vmatpush.msra.mxu0 0.0
    %315 = vmatpush.msra.mxu0 %v237
    %316 = vmatpush.msra.mxu0 %v235
    %317 = vmatpush.msra.mxu0 %v233
    %318 = vmatpush.msra.mxu0 %v231
    %319 = vmatmul.f32.gmra.mxu0 %v266
    %v320 = vpop.f32.mrf.mxu0
    %v321 = vadd.f32 %v251, %v320
    %322 = vmatmul.f32.gmra.mxu0 %v269
    %v323 = vpop.f32.mrf.mxu0
    %324 = vmatmul.f32.gmra.mxu0 %v272
    %v325 = vpop.f32.mrf.mxu0
    %326 = vmatmul.f32.gmra.mxu0 %v275
    %v327 = vpop.f32.mrf.mxu0
    %328 = vdwg.mxu0
    %v331 = vrot.slane %v321, 7
    %vm332 = vcmask 1040384
    %v333 = vsel %vm332, %v295, %v331
    %v335 = vlaneseq
    %vm336 = vcmp.ge.s32.totalorder %v335, 0
    %vm337 = vcmp.lt.s32.totalorder %v335, 256
    %vm338 = vmand %vm336, %vm337
    %339 = vst.msk [vmem:[#allocation2] sm:$0x3] %vm338, %v333
    // Predicated region
    $region14: #{fcn_forward.1} parent=1 // pred_check
      _
    $region15: #{fcn_forward.1} parent=1 // pred_check_branch
      %341 = sbr.rel (0) target = $region17
    $region16: #{fcn_forward.1} parent=1 // pred_region
      %343 = vsyncadd [#allocation3], 0
      %s345 = sshll.u32 [#allocation2], 4
      %s346 = int_to_ptr.vmem [resolvable:$true] %s345
      %s347 = sshll.u32 %s3, 4
      %s348 = int_to_ptr.hbm [resolvable:$true] %s347
      %350 = dma.vmem_to_hbm [thread:$0]  %s346, 32, %s348, [#allocation3]
    $region17: #{fcn_forward.1} parent=1 // pred_fallthru
      _
    // Predicated region
    $region18: #{fcn_forward.1} parent=1 // pred_check
      _
    $region19: #{fcn_forward.1} parent=1 // pred_check_branch
      %352 = sbr.rel (0) target = $region21
    $region20: #{fcn_forward.1} parent=1 // pred_region
      %354 = dma.done [#allocation3], 32
    $region21: #{fcn_forward.1} parent=1 // pred_fallthru
      _
    %355 = vsyncpa [#allocation3], 1

</llo_original>
